<compile_context>
chip_gen: v7x
topology: tpu7x:2x2x1
jax: 0.10.0
libtpu: 0.0.40
codegen_flags: <defaults>
</compile_context>

<pallas_src>
import functools

import jax
import jax.numpy as jnp
from jax.experimental import pallas as pl
from jax.experimental.pallas import tpu as pltpu


def _rmsnorm_kernel(x_ref, w_ref, o_ref, *, eps: float, inv_c: float):
    # x_ref: (TILE_ROWS, C) in x.dtype, w_ref: (1, C) f32, o_ref: (TILE_ROWS, C)
    xf = x_ref[...].astype(jnp.float32)
    # sum (XLU) * precomputed 1/C scalar instead of jnp.mean; rsqrt on the EUP.
    ss = jnp.sum(xf * xf, axis=-1, keepdims=True) * inv_c      # (TILE_ROWS, 1)
    inv_rms = jax.lax.rsqrt(ss + eps)
    # Re-read x_ref (a VMEM load, not HBM) instead of reusing `xf` so the
    # compiler does not need to keep a full f32 copy of the tile live across
    # the reduction; the extra per-vreg cast is free (VALU slack is huge in an
    # HBM-bound kernel).  Matches the PyTorch spec: f32 normalize, f32 weight
    # multiply, cast back to x.dtype.
    o_ref[...] = (x_ref[...].astype(jnp.float32) * inv_rms * w_ref[...]
                  ).astype(o_ref.dtype)


def _vmem_limit_bytes() -> int:
    """Scoped-VMEM limit for this chip generation, with a safe fallback.

    Half of physical VMEM: 64 MiB on v5e/v6e (128 MiB physical), 32 MiB on
    v7x (64 MiB physical).  Always >= 32 MiB so v5e's 16 MiB scoped default
    never silently applies.
    """
    try:
        cap = int(pltpu.get_tpu_info().vmem_capacity_bytes)
    except Exception:                       # query unavailable -> conservative
        cap = 64 * 1024 * 1024
    return max(32 * 1024 * 1024, min(cap // 2, 96 * 1024 * 1024))


def _pick_tile_rows(rows: int, C: int, itemsize: int, vmem_budget: int) -> int:
    """Largest sublane-aligned row tile whose footprint fits the budget.

    Footprint per row ~ double-buffered input + double-buffered output blocks
    in the activation dtype (4 * itemsize) plus a small f32 slop for per-row
    stats / working vregs (the kernel avoids a full f32 tile copy).
    No divisibility search: Pallas handles the ragged last block (rows outside
    the array are never written back), so degenerate tiny tiles for awkward
    row counts are impossible.
    """
    bytes_per_row = C * (4 * itemsize + 4)
    max_tile = (vmem_budget // bytes_per_row) // 8 * 8      # sublane-aligned
    max_tile = max(8, min(max_tile, 8192))
    if rows <= max_tile:
        # Single block covering every row: full-extent second-to-last dim is
        # always a legal block shape (no (8,128) constraint, no padding).
        return rows
    return max_tile


def wan_rmsnorm(x: jax.Array, weight: jax.Array, eps: float = 1e-6,
                tile_rows: int | None = None) -> jax.Array:
    """RMSNorm over the last dim of x=[B, L, C], scaled by weight=[C].

    Matches the PyTorch reference: x.float(), rms = sqrt(mean(x^2)+eps),
    (x/rms)*weight in f32, then cast back to x.dtype.
    Note: for full HBM/lane efficiency C should be a multiple of 128 (true for
    Wan model dims 1536/5120); smaller C works but wastes lanes.
    """
    B, L, C = x.shape
    rows = B * L
    x2d = x.reshape(rows, C)                 # no jnp.pad: avoids an extra HBM pass
    w2d = weight.astype(jnp.float32).reshape(1, C)   # cast once, resident in VMEM

    vmem_limit = _vmem_limit_bytes()
    if tile_rows is None:
        # Leave ~25% headroom under the scoped limit for the resident weight
        # block, semaphores and compiler temporaries.
        tile_rows = _pick_tile_rows(rows, C, jnp.dtype(x.dtype).itemsize,
                                    vmem_budget=int(vmem_limit * 0.75))

    grid = (pl.cdiv(rows, tile_rows),)
    # Ragged last block: padded rows feed rsqrt with stale data, but they are
    # never written back, so this is benign — do not "fix" with masked writes.
    out = pl.pallas_call(
        functools.partial(_rmsnorm_kernel, eps=eps, inv_c=1.0 / C),
        out_shape=jax.ShapeDtypeStruct((rows, C), x.dtype),
        grid_spec=pltpu.PrefetchScalarGridSpec(
            num_scalar_prefetch=0,
            grid=grid,
            in_specs=[
                pl.BlockSpec((tile_rows, C), lambda i: (i, 0)),
                pl.BlockSpec((1, C), lambda i: (0, 0)),   # weight stays resident
            ],
            out_specs=pl.BlockSpec((tile_rows, C), lambda i: (i, 0)),
        ),
        compiler_params=pltpu.CompilerParams(
            # TODO(synk): on v7x, if profiling shows a single TC issuing all
            # DMAs, shard rows explicitly (CORE_PARALLEL leading axis of 2)
            # instead of relying on "parallel" alone.
            dimension_semantics=("parallel",),
            vmem_limit_bytes=int(vmem_limit)),
    )(x2d, w2d)

    return out.reshape(B, L, C)


def _reference(x, weight, eps):
    xf = x.astype(jnp.float32)
    rms = jnp.sqrt(jnp.mean(xf * xf, axis=-1, keepdims=True) + eps)
    return (xf / rms * weight.astype(jnp.float32)).astype(x.dtype)


if __name__ == "__main__":
    eps = 1e-6
    key = jax.random.PRNGKey(0)
    kx, kw, kx2, kw2 = jax.random.split(key, 4)

    # Small shape consistent with the module's forward: x is [B, L, C].
    B, L, C = 2, 8, 32
    x = jax.random.normal(kx, (B, L, C), dtype=jnp.bfloat16)
    # nn.Parameter(torch.ones(dim)) -> ones; perturb slightly (deterministic)
    # so the scale actually matters.
    weight = jnp.ones((C,), dtype=jnp.float32) + 0.01 * jax.random.normal(
        kw, (C,), dtype=jnp.float32)

    out = jax.block_until_ready(wan_rmsnorm(x, weight, eps=eps))
    ref = _reference(x, weight, eps)
    assert out.shape == x.shape and out.dtype == x.dtype
    assert jnp.allclose(out.astype(jnp.float32), ref.astype(jnp.float32),
                        atol=1e-2, rtol=1e-2)

    # Second (still small) case: lane-dense C, row count NOT a multiple of the
    # forced tile, exercising the ragged-last-block path.
    B2, L2, C2 = 2, 250, 128                 # rows = 500, tile_rows = 128
    x2 = jax.random.normal(kx2, (B2, L2, C2), dtype=jnp.bfloat16)
    w2 = jnp.ones((C2,), dtype=jnp.float32) + 0.01 * jax.random.normal(
        kw2, (C2,), dtype=jnp.float32)
    out2 = jax.block_until_ready(wan_rmsnorm(x2, w2, eps=eps, tile_rows=128))
    ref2 = _reference(x2, w2, eps)
    assert jnp.allclose(out2.astype(jnp.float32), ref2.astype(jnp.float32),
                        atol=1e-2, rtol=1e-2)

    # Third case: default (auto) tile sizing on a multi-thousand-row input.
    x3 = jax.random.normal(kx, (1, 4096 + 8, 128), dtype=jnp.bfloat16)
    w3 = jnp.ones((128,), dtype=jnp.float32)
    out3 = jax.block_until_ready(wan_rmsnorm(x3, w3, eps=eps))
    ref3 = _reference(x3, w3, eps)
    assert jnp.allclose(out3.astype(jnp.float32), ref3.astype(jnp.float32),
                        atol=1e-2, rtol=1e-2)

    print("KERNEL_OK")
</pallas_src>

<mosaic_0001>
module attributes {stable_mosaic.version = 11 : i64} {
  func.func @_rmsnorm_kernel(%arg0: i32, %arg1: memref<16x32xbf16, #tpu.memory_space<vmem>>, %arg2: memref<1x32xf32, #tpu.memory_space<vmem>>, %arg3: memref<16x32xbf16, #tpu.memory_space<vmem>>) attributes {dimension_semantics = [#tpu.dimension_semantics<parallel>], iteration_bounds = array<i64: 1>, scalar_prefetch = 0 : i64, scratch_operands = 0 : i64, tpu.core_type = #tpu.core_type<tc>, window_params = [{transform_indices = @transform_0, window_bounds = array<i64: 16, 32>}, {pipeline_mode = #tpu.pipeline_mode<synchronous>, transform_indices = @transform_1, window_bounds = array<i64: 1, 32>}, {transform_indices = @transform_2, window_bounds = array<i64: 16, 32>}]} {
    %c0 = arith.constant 0 : index
    %c0_0 = arith.constant 0 : index
    %0 = vector.load %arg1[%c0, %c0_0] : memref<16x32xbf16, #tpu.memory_space<vmem>>, vector<16x32xbf16>
    %1 = arith.extf %0 : vector<16x32xbf16> to vector<16x32xf32>
    %2 = arith.mulf %1, %1 : vector<16x32xf32>
    %cst = arith.constant dense<0.000000e+00> : vector<16xf32>
    %3 = vector.multi_reduction <add>, %2, %cst [1] : vector<16x32xf32> to vector<16xf32>
    %4 = vector.shape_cast %3 : vector<16xf32> to vector<16x1xf32>
    %cst_1 = arith.constant 3.125000e-02 : f32
    %5 = vector.broadcast %cst_1 : f32 to vector<16x1xf32>
    %6 = arith.mulf %4, %5 : vector<16x1xf32>
    %cst_2 = arith.constant 9.99999997E-7 : f32
    %7 = vector.broadcast %cst_2 : f32 to vector<16x1xf32>
    %8 = arith.addf %6, %7 : vector<16x1xf32>
    %9 = math.rsqrt %8 : vector<16x1xf32>
    %c0_3 = arith.constant 0 : index
    %c0_4 = arith.constant 0 : index
    %10 = vector.load %arg1[%c0_3, %c0_4] : memref<16x32xbf16, #tpu.memory_space<vmem>>, vector<16x32xbf16>
    %11 = arith.extf %10 : vector<16x32xbf16> to vector<16x32xf32>
    %12 = vector.broadcast %9 : vector<16x1xf32> to vector<16x32xf32>
    %13 = arith.mulf %11, %12 : vector<16x32xf32>
    %c0_5 = arith.constant 0 : index
    %c0_6 = arith.constant 0 : index
    %14 = vector.load %arg2[%c0_5, %c0_6] : memref<1x32xf32, #tpu.memory_space<vmem>>, vector<1x32xf32>
    %15 = vector.broadcast %14 : vector<1x32xf32> to vector<16x32xf32>
    %16 = arith.mulf %13, %15 : vector<16x32xf32>
    %17 = arith.truncf %16 : vector<16x32xf32> to vector<16x32xbf16>
    %c0_7 = arith.constant 0 : index
    %c0_8 = arith.constant 0 : index
    %18 = vector.load %arg3[%c0_7, %c0_8] : memref<16x32xbf16, #tpu.memory_space<vmem>>, vector<16x32xbf16>
    tpu.vector_store %arg3[%c0_7, %c0_8], %17 {strides = array<i32>} : memref<16x32xbf16, #tpu.memory_space<vmem>>, vector<16x32xbf16>,
    return
  }
  func.func @transform_0(%arg0: i32) -> (i32, i32) {
    %c0_i32 = arith.constant 0 : i32
    %c0_i32_0 = arith.constant 0 : i32
    return %arg0, %c0_i32 : i32, i32
  }
  func.func @transform_1(%arg0: i32) -> (i32, i32) {
    %c0_i32 = arith.constant 0 : i32
    %c0_i32_0 = arith.constant 0 : i32
    %c0_i32_1 = arith.constant 0 : i32
    return %c0_i32, %c0_i32_0 : i32, i32
  }
  func.func @transform_2(%arg0: i32) -> (i32, i32) {
    %c0_i32 = arith.constant 0 : i32
    %c0_i32_0 = arith.constant 0 : i32
    return %arg0, %c0_i32 : i32, i32
  }
}

</mosaic_0001>

<llo_original>
// kernel: tpu_custom_call.1
$region0: #{tpu_custom_call.1}
  #allocation0 [shape = 'u32[]', space=smem, size = 0x4, offset = 0x4, fixed_abs, tag = 'smem constant byte address 0x4 - core index']
  #allocation1 [shape = 'u32[144,128]{1,0:T(1,128)}', space=vmem, size = 0x12000, scoped, tag = 'internal scratch']
  %s0 = inlined_call_operand.hbm [shape: bf16[16,32], index: 0, kind: input, shape index: {}]
  %s1 = inlined_call_operand.vmem [shape: f32[1,32], index: 1, kind: input, shape index: {}]
  %s2 = inlined_call_operand.hbm [shape: bf16[16,32], index: 2, kind: output, shape index: {}]
  %s3 = sld [smem:[#allocation0]]
  $region22: #{tpu_custom_call.1} parent=0
    _
  %s5 = ssub.s32 1, %s3
  %s6 = scalar_select 0, %s5, %s3
  $region1: #{tpu_custom_call.1} parent=0
    #allocation2 [shape = 'u8[4096]{0}', space=vmem, size = 0x1000, scoped, tag = 'input window, operand 0, single buffered']
    #allocation3 [shape = 's32[1]{0}', space=sflag, size = 0x4, scoped, tag = 'scoped memory for tpu_custom_call.1']
    #allocation4 [shape = 's32[1]{0}', space=sflag, size = 0x4, scoped, tag = 'scoped memory for tpu_custom_call.1']
    #allocation5 [shape = 'u8[4096]{0}', space=vmem, size = 0x1000, scoped, tag = 'output window, operand 0, single buffered']
    %7 = vsyncpa [#allocation3], 0
    %8 = vsyncpa [#allocation4], 0
    // Predicated region
    $region2: #{tpu_custom_call.1} parent=1 // pred_check
      _
    $region3: #{tpu_custom_call.1} parent=1 // pred_check_branch
      %10 = sbr.rel (0) target = $region5
    $region4: #{tpu_custom_call.1} parent=1 // pred_region
      %s12 = ssub.s32 128, 128
      %13 = vsyncadd [#allocation3], %s12
      %s14 = sshll.u32 [#allocation2], 4
      %s15 = int_to_ptr.vmem [resolvable:$true] %s14
      %20 = dma.hbm_to_vmem [thread:$0]  %s0, 128, %s15, [#allocation3], 64, 64, 4
    $region5: #{tpu_custom_call.1} parent=1 // pred_fallthru
      _
    // Predicated region
    $region6: #{tpu_custom_call.1} parent=1 // pred_check
      _
    $region7: #{tpu_custom_call.1} parent=1 // pred_check_branch
      %22 = sbr.rel (0) target = $region9
    $region8: #{tpu_custom_call.1} parent=1 // pred_region
      _
    $region9: #{tpu_custom_call.1} parent=1 // pred_fallthru
      _
    // Predicated region
    $region10: #{tpu_custom_call.1} parent=1 // pred_check
      _
    $region11: #{tpu_custom_call.1} parent=1 // pred_check_branch
      %24 = sbr.rel (0) target = $region13
    $region12: #{tpu_custom_call.1} parent=1 // pred_region
      %25 = dma.done [#allocation3], 128
    $region13: #{tpu_custom_call.1} parent=1 // pred_fallthru
      _
    %v26 = vld [vmem:[#allocation2] sm:$0xf]
    %v27 = vld [vmem:[#allocation2 + $0x4] sm:$0xf]
    %v28 = vunpack.c.l.bf16 %v26
    %v29 = vunpack.c.l.bf16 %v27
    %v30 = vmul.f32 %v28, %v28
    %v31 = vmul.f32 %v29, %v29
    %vm32 = vcmask 261120
    %v33 = vsel %vm32, %v30, 0.0
    %34 = vadd.xlane.f32.xlu0 %v33
    %v35 = vpop.xlane.xlu0 %34
    %v36 = vsel %vm32, %v31, 0.0
    %37 = vadd.xlane.f32.xlu0 %v36
    %v38 = vpop.xlane.xlu0 %37
    %v39 = vmul.f32 %v35, 0.03125
    %v40 = vmul.f32 %v38, 0.03125
    %v41 = vadd.f32 %v39, 1e-06
    %v42 = vadd.f32 %v40, 1e-06
    %v43 = vrsqrt.pop %v41
    %v44 = vrsqrt.pop %v42
    %v45 = vmul.f32 %v28, %v43
    %v46 = vmul.f32 %v29, %v44
    %v47 = vld [vmem:[%s1] sm:$0x1]
    %v49 = vlaneseq
    %v50 = vshrl.u32 %v49, 7
    %v51 = vsub.s32 0, %v50
    %v52 = vrot.slane %v47, %v51
    %v54 = vmul.f32 %v45, %v52
    %v55 = vmul.f32 %v46, %v52
    %v56 = vpack.c.bf16 %v55, %v54
    %v58 = vunpack.c.l.b16 %v56
    %v59 = vunpack.c.h.b16 %v56
    %v60 = vpack.c.b16 %v58, %v58
    %v61 = vpack.c.b16 %v59, %v59
    %vm64 = vcmask 257024
    %65 = vst.msk [vmem:[#allocation5] sm:$0xf] %vm64, %v60
    %66 = vst.msk [vmem:[#allocation5 + $0x4] sm:$0xf] %vm64, %v61
    // Predicated region
    $region14: #{tpu_custom_call.1} parent=1 // pred_check
      _
    $region15: #{tpu_custom_call.1} parent=1 // pred_check_branch
      %68 = sbr.rel (0) target = $region17
    $region16: #{tpu_custom_call.1} parent=1 // pred_region
      %s70 = ssub.s32 128, 128
      %71 = vsyncadd [#allocation4], %s70
      %s72 = sshll.u32 [#allocation5], 4
      %s73 = int_to_ptr.vmem [resolvable:$true] %s72
      %78 = dma.vmem_to_hbm [thread:$0]  %s73, 128, %s2, [#allocation4], 64, 64, 4
    $region17: #{tpu_custom_call.1} parent=1 // pred_fallthru
      _
    // Predicated region
    $region18: #{tpu_custom_call.1} parent=1 // pred_check
      _
    $region19: #{tpu_custom_call.1} parent=1 // pred_check_branch
      %80 = sbr.rel (0) target = $region21
    $region20: #{tpu_custom_call.1} parent=1 // pred_region
      %81 = dma.done [#allocation4], 128
    $region21: #{tpu_custom_call.1} parent=1 // pred_fallthru
      _
    %82 = vsyncpa [#allocation3], 1
    %83 = vsyncpa [#allocation4], 1

</llo_original>
